<compile_context>
chip_gen: v5e
topology: v5e:2x2
jax: 0.10.0
libtpu: 0.0.40
codegen_flags: <defaults>
</compile_context>

<pallas_src>
import jax
import jax.numpy as jnp
from jax.experimental import pallas as pl
from jax.experimental.pallas import tpu as pltpu


def _round_up(x, m):
    return ((x + m - 1) // m) * m


def _cdiv(a, b):
    return -(-a // b)


def _make_avgpool_kernel(block_n, n_total, inv_n):
    num_chunks = block_n // 128
    rem = n_total % block_n  # valid columns in the last reduction block (0 -> full)

    def _accumulate(x_ref, acc_ref, valid_cols):
        # VPU accumulation: fold each 128-lane chunk of this tile into the
        # (rows, 128) float32 partial-sum accumulator.  Read acc once, write
        # once; chunk slices are static so the ref views are free.
        acc = acc_ref[...]
        for j in range(num_chunks):
            start = j * 128
            if start >= valid_cols:
                break  # chunk entirely past the reduction tail: contributes 0
            chunk = x_ref[:, start:start + 128].astype(jnp.float32)
            if start + 128 > valid_cols:
                # Straddling chunk: zero the out-of-bounds lanes (their VMEM
                # contents are unspecified, possibly NaN garbage).
                lane = jax.lax.broadcasted_iota(jnp.int32, chunk.shape, 1)
                chunk = jnp.where(lane < (valid_cols - start), chunk, 0.0)
            acc = acc + chunk
        acc_ref[...] = acc

    def kernel(x_ref, o_ref, acc_ref):
        k = pl.program_id(1)
        last = pl.num_programs(1) - 1

        @pl.when(k == 0)
        def _():
            acc_ref[...] = jnp.zeros_like(acc_ref)

        if rem == 0:
            # n divides evenly into blocks: no masking anywhere.
            _accumulate(x_ref, acc_ref, block_n)
        else:
            @pl.when(k != last)
            def _():
                _accumulate(x_ref, acc_ref, block_n)

            @pl.when(k == last)
            def _():
                _accumulate(x_ref, acc_ref, rem)

        # Finalize: one cross-lane (XLU) reduce + scale, only on the last
        # reduction step.
        @pl.when(k == last)
        def _():
            s = jnp.sum(acc_ref[...], axis=-1, keepdims=True)  # (rows, 1)
            o_ref[...] = (s * inv_n).astype(o_ref.dtype)

    return kernel


def avg_pool3d(x, *, block_rows=256, block_n=None):
    """Global average pool over the last three dims of (b, c, t, h, w) -> (b, c)."""
    b, c, t, h, w = x.shape
    n = t * h * w
    rows = b * c

    itemsize = jnp.dtype(x.dtype).itemsize
    # Dtype-aware sublane packing: 8 rows for 4-byte, 16 for 2-byte, 32 for 1-byte.
    sub = max(8, 32 // max(itemsize, 1))

    if block_n is None:
        # ~8 MiB per (256-row) input block; scale lanes up for narrow dtypes so
        # bytes-per-DMA-step stay constant.  Cap the unrolled chunk count.
        block_n = min((8 * 1024 * 1024) // (256 * itemsize), 16384)

    block_rows = max(sub, min(_round_up(block_rows, sub), _round_up(rows, sub)))
    block_n = max(128, min(_round_up(block_n, 128), _round_up(n, 128)))

    # Megacore (v7x): make sure the "parallel" row axis has >= 2 blocks when
    # the row count allows it; costs ~nothing on single-core chips.
    if _cdiv(rows, block_rows) == 1 and rows >= 4 * sub:
        block_rows = _round_up(_cdiv(rows, 2), sub)

    grid = (_cdiv(rows, block_rows), _cdiv(n, block_n))

    # Plain-JAX glue: flatten only (a free reshape), no padding copy.
    x_flat = x.reshape(rows, n)

    kernel = _make_avgpool_kernel(block_n, n, 1.0 / n)

    cost = pl.CostEstimate(
        flops=rows * n,
        transcendentals=0,
        bytes_accessed=rows * n * itemsize + rows * itemsize,
    )

    out = pl.pallas_call(
        kernel,
        out_shape=jax.ShapeDtypeStruct((rows, 1), x.dtype),
        grid_spec=pltpu.PrefetchScalarGridSpec(
            num_scalar_prefetch=0,
            grid=grid,
            in_specs=[pl.BlockSpec((block_rows, block_n), lambda r, k: (r, k))],
            out_specs=pl.BlockSpec((block_rows, 1), lambda r, k: (r, 0)),
            scratch_shapes=[pltpu.VMEM((block_rows, 128), jnp.float32)],
        ),
        compiler_params=pltpu.CompilerParams(
            dimension_semantics=("parallel", "arbitrary"),
            vmem_limit_bytes=48 * 1024 * 1024,
        ),
        cost_estimate=cost,
    )(x_flat)

    return out[:, 0].reshape(b, c)


if __name__ == "__main__":
    key = jax.random.PRNGKey(0)
    b, c, t, h, w = 2, 4, 4, 8, 8
    x = jax.random.normal(key, (b, c, t, h, w), dtype=jnp.float32)

    out = avg_pool3d(x)
    out = jax.block_until_ready(out)

    # Reference (matches the PyTorch module semantics exactly)
    ref = x.sum(-1).sum(-1).sum(-1) / (t * h * w)

    assert out.shape == (b, c), f"bad shape {out.shape}"
    assert jnp.allclose(out, ref, atol=1e-5, rtol=1e-5), "mismatch vs reference"
    print("KERNEL_OK")
</pallas_src>

<mosaic_0001>
module attributes {stable_mosaic.version = 11 : i64} {
  func.func @kernel(%arg0: i32, %arg1: i32, %arg2: memref<8x256xf32, #tpu.memory_space<vmem>>, %arg3: memref<8x1xf32, #tpu.memory_space<vmem>>, %arg4: memref<8x128xf32, #tpu.memory_space<vmem>>) attributes {dimension_semantics = [#tpu.dimension_semantics<parallel>, #tpu.dimension_semantics<arbitrary>], iteration_bounds = array<i64: 1, 1>, scalar_prefetch = 0 : i64, scratch_operands = 1 : i64, tpu.core_type = #tpu.core_type<tc>, window_params = [{transform_indices = @transform_0, window_bounds = array<i64: 8, 256>}, {transform_indices = @transform_1, window_bounds = array<i64: 8, 1>}]} {
    %c0_i32 = arith.constant 0 : i32
    %0 = arith.cmpi eq, %arg1, %c0_i32 : i32
    %1 = arith.extui %0 : i1 to i32
    %c0_i32_0 = arith.constant 0 : i32
    %2 = arith.cmpi ne, %1, %c0_i32_0 : i32
    scf.if %2 {
      %cst = arith.constant 0.000000e+00 : f32
      %12 = vector.broadcast %cst : f32 to vector<8x128xf32>
      %c0_9 = arith.constant 0 : index
      %c0_10 = arith.constant 0 : index
      %13 = vector.load %arg4[%c0_9, %c0_10] : memref<8x128xf32, #tpu.memory_space<vmem>>, vector<8x128xf32>
      tpu.vector_store %arg4[%c0_9, %c0_10], %12 {strides = array<i32>} : memref<8x128xf32, #tpu.memory_space<vmem>>, vector<8x128xf32>,
    } else {
    }
    %c0 = arith.constant 0 : index
    %c0_1 = arith.constant 0 : index
    %3 = vector.load %arg4[%c0, %c0_1] : memref<8x128xf32, #tpu.memory_space<vmem>>, vector<8x128xf32>
    %c0_2 = arith.constant 0 : index
    %c0_3 = arith.constant 0 : index
    %4 = vector.load %arg2[%c0_2, %c0_3] : memref<8x256xf32, #tpu.memory_space<vmem>>, vector<8x128xf32>
    %5 = arith.addf %3, %4 : vector<8x128xf32>
    %c0_4 = arith.constant 0 : index
    %c128 = arith.constant 128 : index
    %6 = vector.load %arg2[%c0_4, %c128] : memref<8x256xf32, #tpu.memory_space<vmem>>, vector<8x128xf32>
    %7 = arith.addf %5, %6 : vector<8x128xf32>
    %c0_5 = arith.constant 0 : index
    %c0_6 = arith.constant 0 : index
    %8 = vector.load %arg4[%c0_5, %c0_6] : memref<8x128xf32, #tpu.memory_space<vmem>>, vector<8x128xf32>
    tpu.vector_store %arg4[%c0_5, %c0_6], %7 {strides = array<i32>} : memref<8x128xf32, #tpu.memory_space<vmem>>, vector<8x128xf32>,
    %c0_i32_7 = arith.constant 0 : i32
    %9 = arith.cmpi eq, %arg1, %c0_i32_7 : i32
    %10 = arith.extui %9 : i1 to i32
    %c0_i32_8 = arith.constant 0 : i32
    %11 = arith.cmpi ne, %10, %c0_i32_8 : i32
    scf.if %11 {
      %c0_9 = arith.constant 0 : index
      %c0_10 = arith.constant 0 : index
      %12 = vector.load %arg4[%c0_9, %c0_10] : memref<8x128xf32, #tpu.memory_space<vmem>>, vector<8x128xf32>
      %cst = arith.constant dense<0.000000e+00> : vector<8xf32>
      %13 = vector.multi_reduction <add>, %12, %cst [1] : vector<8x128xf32> to vector<8xf32>
      %14 = vector.shape_cast %13 : vector<8xf32> to vector<8x1xf32>
      %cst_11 = arith.constant 3.906250e-03 : f32
      %15 = vector.broadcast %cst_11 : f32 to vector<8x1xf32>
      %16 = arith.mulf %14, %15 : vector<8x1xf32>
      %c0_12 = arith.constant 0 : index
      %c0_13 = arith.constant 0 : index
      %17 = vector.load %arg3[%c0_12, %c0_13] : memref<8x1xf32, #tpu.memory_space<vmem>>, vector<8x1xf32>
      tpu.vector_store %arg3[%c0_12, %c0_13], %16 {strides = array<i32>} : memref<8x1xf32, #tpu.memory_space<vmem>>, vector<8x1xf32>,
    } else {
    }
    return
  }
  func.func @transform_0(%arg0: i32, %arg1: i32) -> (i32, i32) {
    %c0_i32 = arith.constant 0 : i32
    return %arg0, %arg1 : i32, i32
  }
  func.func @transform_1(%arg0: i32, %arg1: i32) -> (i32, i32) {
    %c0_i32 = arith.constant 0 : i32
    %c0_i32_0 = arith.constant 0 : i32
    return %arg0, %c0_i32 : i32, i32
  }
}

</mosaic_0001>

<llo_original>
// kernel: tpu_custom_call.1
$region0: #{tpu_custom_call.1}
  #allocation0 [shape = 'u32[]', space=smem, size = 0x4, offset = 0x4, fixed_abs, tag = 'smem constant byte address 0x4 - core index']
  #allocation1 [shape = 'u32[72,128]{1,0:T(1,128)}', space=vmem, size = 0x9000, scoped, tag = 'internal scratch']
  #allocation2 [shape = 'f32[8,128]{1,0:T(8,128)}', space=vmem, size = 0x1000, scoped, tag = 'scratch operand']
  %s0 = inlined_call_operand.hbm [shape: f32[8,256], index: 0, kind: input, shape index: {}]
  %s1 = inlined_call_operand.vmem [shape: f32[8,1], index: 1, kind: output, shape index: {}]
  %s2 = sld [smem:[#allocation0]]
  $region26: #{tpu_custom_call.1} parent=0
    _
  %s4 = ssub.s32 1, %s2
  %s5 = scalar_select 0, %s4, %s2
  $region1: #{tpu_custom_call.1} parent=0
    #allocation3 [shape = 'u8[8192]{0}', space=vmem, size = 0x2000, scoped, tag = 'input window, operand 0, single buffered']
    #allocation4 [shape = 's32[1]{0}', space=sflag, size = 0x4, scoped, tag = 'scoped memory for tpu_custom_call.1']
    %6 = vsyncpa [#allocation4], 0
    // Predicated region
    $region2: #{tpu_custom_call.1} parent=1 // pred_check
      _
    $region3: #{tpu_custom_call.1} parent=1 // pred_check_branch
      %8 = sbr.rel (0) target = $region5
    $region4: #{tpu_custom_call.1} parent=1 // pred_region
      %10 = vsyncadd [#allocation4], 0
      %s12 = sshll.u32 %s0, 4
      %s13 = int_to_ptr.hbm [resolvable:$true] %s12
      %s14 = sshll.u32 [#allocation3], 4
      %s15 = int_to_ptr.vmem [resolvable:$true] %s14
      %17 = dma.hbm_to_vmem [thread:$0]  %s13, 256, %s15, [#allocation4]
    $region5: #{tpu_custom_call.1} parent=1 // pred_fallthru
      _
    // Predicated region
    $region6: #{tpu_custom_call.1} parent=1 // pred_check
      _
    $region7: #{tpu_custom_call.1} parent=1 // pred_check_branch
      %19 = sbr.rel (0) target = $region9
    $region8: #{tpu_custom_call.1} parent=1 // pred_region
      %21 = dma.done [#allocation4], 256
    $region9: #{tpu_custom_call.1} parent=1 // pred_fallthru
      _
    %p22 = scmp.eq.s32.totalorder 0, 0
    // Predicated region
    $region10: #{tpu_custom_call.1} parent=1 // pred_check
      %p23 = pneg %p22
    $region11: #{tpu_custom_call.1} parent=1 // pred_check_branch
      %25 = sbr.rel (%p23) target = $region13
    $region12: #{tpu_custom_call.1} parent=1 // pred_region
      %26 = vst [vmem:[#allocation2] sm:$0xff] 0.0
    $region13: #{tpu_custom_call.1} parent=1 // pred_fallthru
      _
    %v27 = vld [vmem:[#allocation2] sm:$0xff]
    %v28 = vld [vmem:[#allocation3] sm:$0xff]
    %v29 = vadd.f32 %v27, %v28
    %v30 = vld [vmem:[#allocation3 + $0x8] sm:$0xff]
    %v31 = vadd.f32 %v29, %v30
    %32 = vst [vmem:[#allocation2] sm:$0xff] %v31
    // Predicated region
    $region14: #{tpu_custom_call.1} parent=1 // pred_check
      %p33 = pneg %p22
    $region15: #{tpu_custom_call.1} parent=1 // pred_check_branch
      %35 = sbr.rel (%p33) target = $region17
    $region16: #{tpu_custom_call.1} parent=1 // pred_region
      %v36 = vld [vmem:[#allocation2] sm:$0xff]
      %37 = vadd.xlane.f32.xlu0 %v36
      %v38 = vpop.xlane.xlu0 %37
      %v39 = vmul.f32 %v38, 0.00390625
      %vm40 = vcmask 7168
      %41 = vst.msk [vmem:[%s1] sm:$0xff] %vm40, %v39
    $region17: #{tpu_custom_call.1} parent=1 // pred_fallthru
      _
    // Predicated region
    $region18: #{tpu_custom_call.1} parent=1 // pred_check
      _
    $region19: #{tpu_custom_call.1} parent=1 // pred_check_branch
      %43 = sbr.rel (0) target = $region21
    $region20: #{tpu_custom_call.1} parent=1 // pred_region
      _
    $region21: #{tpu_custom_call.1} parent=1 // pred_fallthru
      _
    // Predicated region
    $region22: #{tpu_custom_call.1} parent=1 // pred_check
      _
    $region23: #{tpu_custom_call.1} parent=1 // pred_check_branch
      %45 = sbr.rel (0) target = $region25
    $region24: #{tpu_custom_call.1} parent=1 // pred_region
      _
    $region25: #{tpu_custom_call.1} parent=1 // pred_fallthru
      _
    %46 = vsyncpa [#allocation4], 1

</llo_original>
